<compile_context>
chip_gen: v7x
topology: tpu7x:2x2x1
jax: 0.10.0
libtpu: 0.0.40
codegen_flags: <defaults>
</compile_context>

<pallas_src>
import jax
import jax.numpy as jnp
from jax.experimental import pallas as pl
from jax.experimental.pallas import tpu as pltpu

BATCH = 2
NUM_HEADS = 8
SEQ = 128           # query / key length
DIM_PER_HEAD = 16   # model_dim // num_heads in the parent fusion model


def attention_kernel(scale_ref, qt_ref, k_ref, vt_ref, ot_ref):
    """One batch element per grid step.

    Blocks:
      scale_ref : (1,)          SMEM scalar
      qt_ref    : (1, H, D, M)  q transposed  -> per-head (D, M) lane-dense tiles
      k_ref     : (1, H, N, D)  k original    -> per-head (N, D), natural matmul LHS
      vt_ref    : (1, H, D, N)  v transposed  -> per-head (D, N) lane-dense tiles
      ot_ref    : (1, H, D, M)  output transposed, lane-dense (M=128 lanes)
    """
    num_heads = qt_ref.shape[1]
    scale = scale_ref[0]

    # Per-head loop bounds live ranges: one head's working set (~48 vregs) fits in
    # registers instead of spilling ~1.5 MiB of (H,128,128) f32 intermediates per step.
    @pl.loop(0, num_heads)
    def _per_head(h):
        # Fold scale into q (D*M = 2K elements) instead of the (N,M) = 16K score tensor.
        q_t = qt_ref[0, h] * scale                       # (D, M) f32
        k_h = k_ref[0, h]                                # (N, D) f32
        v_t = vt_ref[0, h]                               # (D, N) f32

        # Transposed scores s_t[n, m] = sum_d k[n,d] * q[m,d]  -> (N, M).
        # Natural MXU form (lhs contracts last dim, rhs first) => no relayout;
        # bf16 operands => single-pass MXU, f32 accumulation.
        s_t = jnp.dot(k_h.astype(jnp.bfloat16), q_t.astype(jnp.bfloat16),
                      preferred_element_type=jnp.float32)

        # torch nn.Softmax(dim=2) on (B,H,M,N) normalizes over the QUERY axis M,
        # which is the last (lane) axis of the transposed (N, M) scores.
        # Softmax math kept in f32.
        m_max = jnp.max(s_t, axis=-1, keepdims=True)
        e = jnp.exp(s_t - m_max)
        denom = jnp.sum(e, axis=-1, keepdims=True)
        p_t = e * pl.reciprocal(denom, approx=True)      # (N, M) f32

        # nn.Dropout(attention_dropout) is identity in eval / inference mode.
        # TODO(synk): training-mode dropout (random mask * 1/(1-p)) is not implemented.
        # Transposed context o_t[d, m] = sum_n v[n,d] * p[m,n] -> (D, M);
        # contraction over N=128 (full MXU width), lane-dense output store.
        o_t = jnp.dot(v_t.astype(jnp.bfloat16), p_t.astype(jnp.bfloat16),
                      preferred_element_type=jnp.float32)
        ot_ref[0, h] = o_t.astype(ot_ref.dtype)


@jax.jit
def _attention_fused(q, k, v, scale_arr):
    B, H, M, D = q.shape
    N = k.shape[2]

    # Lane-dense layouts for the kernel: SEQ (=128) minor instead of D (=16).
    q_t = jnp.swapaxes(q, -1, -2)   # (B, H, D, M)
    v_t = jnp.swapaxes(v, -1, -2)   # (B, H, D, N)

    o_t = pl.pallas_call(
        attention_kernel,
        grid=(B,),
        in_specs=[
            pl.BlockSpec(memory_space=pltpu.MemorySpace.SMEM),    # scale scalar
            pl.BlockSpec((1, H, D, M), lambda b: (b, 0, 0, 0)),   # q_t
            pl.BlockSpec((1, H, N, D), lambda b: (b, 0, 0, 0)),   # k
            pl.BlockSpec((1, H, D, N), lambda b: (b, 0, 0, 0)),   # v_t
        ],
        out_specs=pl.BlockSpec((1, H, D, M), lambda b: (b, 0, 0, 0)),
        out_shape=jax.ShapeDtypeStruct((B, H, D, M), q.dtype),
        compiler_params=pltpu.CompilerParams(dimension_semantics=("parallel",)),
        cost_estimate=pl.CostEstimate(
            flops=4 * B * H * M * N * D,
            transcendentals=B * H * M * N,
            bytes_accessed=4 * (q.size + k.size + v.size + B * H * M * D),
        ),
    )(scale_arr, q_t, k, v_t)

    return jnp.swapaxes(o_t, -1, -2)   # back to (B, H, M, D)


def multimodal_attention_forward(q, k, v, scale=None, attn_mask=None):
    # TODO(synk): attn_mask (masked_fill_ with -inf before softmax) is not wired in;
    #             only the default attn_mask=None path of the reference module is implemented.
    assert attn_mask is None, "attn_mask path not implemented"
    # torch does `if scale:` -> only a truthy scale is applied; fold None/0 to 1.0.
    scale_val = float(scale) if scale else 1.0
    scale_arr = jnp.asarray([scale_val], dtype=jnp.float32)
    return _attention_fused(q, k, v, scale_arr)


def reference(q, k, v, scale=None):
    """Pure-JAX reference of the torch module (eval mode, attn_mask=None)."""
    s = jnp.einsum('bhmd,bhnd->bhmn', q, k, precision=jax.lax.Precision.HIGHEST)
    if scale:
        s = s * scale
    p = jax.nn.softmax(s, axis=2)        # torch nn.Softmax(dim=2)
    return jnp.einsum('bhmn,bhnd->bhmd', p, v, precision=jax.lax.Precision.HIGHEST)


if __name__ == "__main__":
    key = jax.random.PRNGKey(0)
    kq, kk, kv = jax.random.split(key, 3)
    q = jax.random.normal(kq, (BATCH, NUM_HEADS, SEQ, DIM_PER_HEAD), jnp.float32)
    k = jax.random.normal(kk, (BATCH, NUM_HEADS, SEQ, DIM_PER_HEAD), jnp.float32)
    v = jax.random.normal(kv, (BATCH, NUM_HEADS, SEQ, DIM_PER_HEAD), jnp.float32)

    # Typical usage from the parent model passes a truthy scale.
    scale = 1.0 / (DIM_PER_HEAD ** 0.5)

    out = multimodal_attention_forward(q, k, v, scale=scale)
    out = jax.block_until_ready(out)

    assert out.shape == (BATCH, NUM_HEADS, SEQ, DIM_PER_HEAD), out.shape
    assert bool(jnp.all(jnp.isfinite(out)))

    ref = reference(q, k, v, scale=scale)
    err = float(jnp.max(jnp.abs(out - ref)))
    assert err < 2e-2, f"max abs error vs reference: {err}"

    print("KERNEL_OK")
</pallas_src>

<mosaic_0001>
module attributes {stable_mosaic.version = 11 : i64} {
  func.func @attention_kernel(%arg0: i32, %arg1: memref<1xf32, #tpu.memory_space<smem>>, %arg2: memref<1x8x16x128xf32, #tpu.memory_space<vmem>>, %arg3: memref<1x8x128x16xf32, #tpu.memory_space<vmem>>, %arg4: memref<1x8x16x128xf32, #tpu.memory_space<vmem>>, %arg5: memref<1x8x16x128xf32, #tpu.memory_space<vmem>>) attributes {dimension_semantics = [#tpu.dimension_semantics<parallel>], iteration_bounds = array<i64: 2>, scalar_prefetch = 0 : i64, scratch_operands = 0 : i64, tpu.core_type = #tpu.core_type<tc>, window_params = [{transform_indices = @transform_0, window_bounds = array<i64: 1>}, {transform_indices = @transform_1, window_bounds = array<i64: 1, 8, 16, 128>}, {transform_indices = @transform_2, window_bounds = array<i64: 1, 8, 128, 16>}, {transform_indices = @transform_3, window_bounds = array<i64: 1, 8, 16, 128>}, {transform_indices = @transform_4, window_bounds = array<i64: 1, 8, 16, 128>}]} {
    %c0 = arith.constant 0 : index
    %0 = memref.load %arg1[%c0] : memref<1xf32, #tpu.memory_space<smem>>
    %c0_i32 = arith.constant 0 : i32
    %c8_i32 = arith.constant 8 : i32
    %1 = arith.addi %c0_i32, %c8_i32 : i32
    %c1_i32 = arith.constant 1 : i32
    scf.for %arg6 = %c0_i32 to %1 step %c1_i32  : i32 {
      %c1_i32_1 = arith.constant 1 : i32
      %2 = arith.muli %arg6, %c1_i32_1 : i32
      %c0_i32_2 = arith.constant 0 : i32
      %3 = arith.addi %c0_i32_2, %2 : i32
      %c0_3 = arith.constant 0 : index
      %4 = arith.index_cast %3 : i32 to index
      %c0_4 = arith.constant 0 : index
      %c0_5 = arith.constant 0 : index
      %5 = vector.load %arg2[%c0_3, %4, %c0_4, %c0_5] : memref<1x8x16x128xf32, #tpu.memory_space<vmem>>, vector<1x1x16x128xf32>
      %6 = vector.shape_cast %5 : vector<1x1x16x128xf32> to vector<16x128xf32>
      %7 = vector.broadcast %0 : f32 to vector<16x128xf32>
      %8 = arith.mulf %6, %7 : vector<16x128xf32>
      %c0_6 = arith.constant 0 : index
      %9 = arith.index_cast %3 : i32 to index
      %c0_7 = arith.constant 0 : index
      %c0_8 = arith.constant 0 : index
      %10 = vector.load %arg3[%c0_6, %9, %c0_7, %c0_8] : memref<1x8x128x16xf32, #tpu.memory_space<vmem>>, vector<1x1x128x16xf32>
      %11 = vector.shape_cast %10 : vector<1x1x128x16xf32> to vector<128x16xf32>
      %c0_9 = arith.constant 0 : index
      %12 = arith.index_cast %3 : i32 to index
      %c0_10 = arith.constant 0 : index
      %c0_11 = arith.constant 0 : index
      %13 = vector.load %arg4[%c0_9, %12, %c0_10, %c0_11] : memref<1x8x16x128xf32, #tpu.memory_space<vmem>>, vector<1x1x16x128xf32>
      %14 = vector.shape_cast %13 : vector<1x1x16x128xf32> to vector<16x128xf32>
      %15 = arith.truncf %11 : vector<128x16xf32> to vector<128x16xbf16>
      %16 = arith.truncf %8 : vector<16x128xf32> to vector<16x128xbf16>
      %cst = arith.constant dense<0.000000e+00> : vector<128x128xf32>
      %17 = tpu.matmul %15, %16, %cst {dimension_numbers = #tpu.dot_dimension_numbers<[1], [0], [0], [1], [0, 0, 1, 1], [], []>} : vector<128x16xbf16>, vector<16x128xbf16>, vector<128x128xf32> -> vector<128x128xf32>
      %cst_12 = arith.constant dense<0xFF800000> : vector<128xf32>
      %18 = vector.multi_reduction <maximumf>, %17, %cst_12 [1] : vector<128x128xf32> to vector<128xf32>
      %19 = vector.shape_cast %18 : vector<128xf32> to vector<128x1xf32>
      %20 = vector.broadcast %19 : vector<128x1xf32> to vector<128x128xf32>
      %21 = arith.subf %17, %20 : vector<128x128xf32>
      %22 = math.exp %21 : vector<128x128xf32>
      %cst_13 = arith.constant dense<0.000000e+00> : vector<128xf32>
      %23 = vector.multi_reduction <add>, %22, %cst_13 [1] : vector<128x128xf32> to vector<128xf32>
      %24 = vector.shape_cast %23 : vector<128xf32> to vector<128x1xf32>
      %25 = tpu.reciprocal %24 {approx = true} : vector<128x1xf32> -> vector<128x1xf32>
      %26 = vector.broadcast %25 : vector<128x1xf32> to vector<128x128xf32>
      %27 = arith.mulf %22, %26 : vector<128x128xf32>
      %28 = arith.truncf %14 : vector<16x128xf32> to vector<16x128xbf16>
      %29 = arith.truncf %27 : vector<128x128xf32> to vector<128x128xbf16>
      %cst_14 = arith.constant dense<0.000000e+00> : vector<16x128xf32>
      %30 = tpu.matmul %28, %29, %cst_14 {dimension_numbers = #tpu.dot_dimension_numbers<[1], [0], [0], [1], [0, 0, 1, 1], [], []>} : vector<16x128xbf16>, vector<128x128xbf16>, vector<16x128xf32> -> vector<16x128xf32>
      %c0_15 = arith.constant 0 : index
      %31 = arith.index_cast %3 : i32 to index
      %c0_16 = arith.constant 0 : index
      %c0_17 = arith.constant 0 : index
      %32 = vector.load %arg5[%c0_15, %31, %c0_16, %c0_17] : memref<1x8x16x128xf32, #tpu.memory_space<vmem>>, vector<1x1x16x128xf32>
      %33 = vector.shape_cast %32 : vector<1x1x16x128xf32> to vector<16x128xf32>
      %34 = vector.shape_cast %30 : vector<16x128xf32> to vector<1x1x16x128xf32>
      tpu.vector_store %arg5[%c0_15, %31, %c0_16, %c0_17], %34 {strides = array<i32>} : memref<1x8x16x128xf32, #tpu.memory_space<vmem>>, vector<1x1x16x128xf32>,
    }
    %c8_i32_0 = arith.constant 8 : i32
    return
  }
  func.func @transform_0(%arg0: i32) -> i32 {
    %c0_i32 = arith.constant 0 : i32
    %c0_i32_0 = arith.constant 0 : i32
    return %c0_i32 : i32
  }
  func.func @transform_1(%arg0: i32) -> (i32, i32, i32, i32) {
    %c0_i32 = arith.constant 0 : i32
    %c0_i32_0 = arith.constant 0 : i32
    %c0_i32_1 = arith.constant 0 : i32
    %c0_i32_2 = arith.constant 0 : i32
    return %arg0, %c0_i32, %c0_i32_0, %c0_i32_1 : i32, i32, i32, i32
  }
  func.func @transform_2(%arg0: i32) -> (i32, i32, i32, i32) {
    %c0_i32 = arith.constant 0 : i32
    %c0_i32_0 = arith.constant 0 : i32
    %c0_i32_1 = arith.constant 0 : i32
    %c0_i32_2 = arith.constant 0 : i32
    return %arg0, %c0_i32, %c0_i32_0, %c0_i32_1 : i32, i32, i32, i32
  }
  func.func @transform_3(%arg0: i32) -> (i32, i32, i32, i32) {
    %c0_i32 = arith.constant 0 : i32
    %c0_i32_0 = arith.constant 0 : i32
    %c0_i32_1 = arith.constant 0 : i32
    %c0_i32_2 = arith.constant 0 : i32
    return %arg0, %c0_i32, %c0_i32_0, %c0_i32_1 : i32, i32, i32, i32
  }
  func.func @transform_4(%arg0: i32) -> (i32, i32, i32, i32) {
    %c0_i32 = arith.constant 0 : i32
    %c0_i32_0 = arith.constant 0 : i32
    %c0_i32_1 = arith.constant 0 : i32
    %c0_i32_2 = arith.constant 0 : i32
    return %arg0, %c0_i32, %c0_i32_0, %c0_i32_1 : i32, i32, i32, i32
  }
}

</mosaic_0001>

<llo_original>
// kernel: _attention_fused.1
$region0: #{_attention_fused.1}
  #allocation0 [shape = 'u32[]', space=smem, size = 0x4, offset = 0x4, fixed_abs, tag = 'smem constant byte address 0x4 - core index']
  #allocation1 [shape = 'u32[144,128]{1,0:T(1,128)}', space=vmem, size = 0x12000, scoped, tag = 'internal scratch']
  #allocation2 [shape = 'f32[1]{0:T(128)S(6)}', space=smem, size = 0x200, scoped, tag = 'scoped memory for _attention_fused.1']
  %s0 = inlined_call_operand.<no memory space> [shape: f32[1], index: 0, kind: input, shape index: {}]
  %s1 = inlined_call_operand.vmem [shape: f32[2,8,16,128], index: 1, kind: input, shape index: {}]
  %s2 = inlined_call_operand.vmem [shape: f32[2,8,128,16], index: 2, kind: input, shape index: {}]
  %s3 = inlined_call_operand.vmem [shape: f32[2,8,16,128], index: 3, kind: input, shape index: {}]
  %s4 = inlined_call_operand.hbm [shape: f32[2,8,16,128], index: 4, kind: output, shape index: {}]
  %s5 = sld [smem:[#allocation0]]
  $region56: #{_attention_fused.1} parent=0
    _
  %s7 = ssub.s32 1, %s5
  %s8 = scalar_select 0, %s7, %s5
  %9 = sst [smem:[#allocation2]] %s0
  $region1: #{_attention_fused.1} parent=0
    #allocation3 [shape = 'u8[131072]{0}', space=vmem, size = 0x20000, scoped, tag = 'output window, operand 0']
    #allocation4 [shape = 's32[2]{0}', space=sflag, size = 0x8, scoped, tag = 'scoped memory for _attention_fused.1']
    %10 = vsyncpa [#allocation4], 0
    %s11 = scalar_lea.sflag [#allocation4], 1
    %12 = vsyncpa %s11, 0
    loop: start=0, step=1, limit=4
    $region2: #{_attention_fused.1} parent=1 // loop_pre_header
      _
    $region3: #{_attention_fused.1} parent=1 // loop_header
      %s14 = sphi 0, %s18
      %p15 = scmp.ge.s32.totalorder %s14, 4
      %s22 = sphi 0, %s22
      %s24 = sphi 0, %s22
      %s25 = sphi 0, %s24
      %s39 = sphi 0, %s25
      %s45 = sphi 0, %s47
      %s48 = sphi 0, %s45
      %s49 = sphi 0, %s48
      %s65 = sphi 0, %s49
      %s71 = sphi 0, %s73
      %s74 = sphi 0, %s71
      %s75 = sphi 0, %s74
      %s91 = sphi 0, %s75
      %s97 = sphi 0, %s99
      %s100 = sphi 0, %s97
      %s101 = sphi 0, %s100
      %s117 = sphi 0, %s101
      %s123 = sphi 0, %s125
      %s126 = sphi 0, %s123
      %s127 = sphi 0, %s126
      %s143 = sphi 0, %s127
    $region4: #{_attention_fused.1} parent=1 // loop_header_branch
      %17 = sbr.rel (%p15) target = $region8
    $region5: #{_attention_fused.1} parent=1 // loop_body
      %s19 = ssub.s32 %s14, 1
      %s20 = ssub.s32 %s14, 2
      %s21 = sadd.s32 %s14, 1
      %s23 = sadd.s32 %s22, 1
      %p26 = scmp.eq.s32.totalorder %s14, 1
      %p27 = scmp.ne.s32.totalorder %s22, %s24
      %p28 = scmp.eq.s32.totalorder %s14, 0
      %p29 = por %p27, %p28
      %p30 = scmp.ne.s32.totalorder %s22, %s24
      %p31 = scmp.eq.s32.totalorder %s19, 1
      %p32 = por %p30, %p31
      %p33 = scmp.ne.s32.totalorder %s24, %s25
      %p34 = scmp.eq.s32.totalorder %s19, 0
      %p35 = por %p33, %p34
      %p36 = scmp.ne.s32.totalorder %s24, %s25
      %p37 = scmp.eq.s32.totalorder %s20, 1
      %p38 = por %p36, %p37
      %p40 = scmp.ne.s32.totalorder %s25, %s39
      %p41 = scmp.eq.s32.totalorder %s20, 0
      %p42 = por %p40, %p41
      %s43 = ssub.s32 %s14, %s21
      %p44 = scmp.eq.s32.totalorder %s43, 0
      %s46 = sadd.s32 %s45, 1
      %s47 = scalar_select %p44, %s45, %s46
      %p50 = pneg %p44
      %p51 = scmp.eq.s32.totalorder %s14, 1
      %p52 = por %p50, %p51
      %p53 = scmp.ne.s32.totalorder %s45, %s48
      %p54 = scmp.eq.s32.totalorder %s14, 0
      %p55 = por %p53, %p54
      %p56 = scmp.ne.s32.totalorder %s45, %s48
      %p57 = scmp.eq.s32.totalorder %s19, 1
      %p58 = por %p56, %p57
      %p59 = scmp.ne.s32.totalorder %s48, %s49
      %p60 = scmp.eq.s32.totalorder %s19, 0
      %p61 = por %p59, %p60
      %p62 = scmp.ne.s32.totalorder %s48, %s49
      %p63 = scmp.eq.s32.totalorder %s20, 1
      %p64 = por %p62, %p63
      %p66 = scmp.ne.s32.totalorder %s49, %s65
      %p67 = scmp.eq.s32.totalorder %s20, 0
      %p68 = por %p66, %p67
      %s69 = ssub.s32 %s14, %s21
      %p70 = scmp.eq.s32.totalorder %s69, 0
      %s72 = sadd.s32 %s71, 1
      %s73 = scalar_select %p70, %s71, %s72
      %p76 = pneg %p70
      %p77 = scmp.eq.s32.totalorder %s14, 1
      %p78 = por %p76, %p77
      %p79 = scmp.ne.s32.totalorder %s71, %s74
      %p80 = scmp.eq.s32.totalorder %s14, 0
      %p81 = por %p79, %p80
      %p82 = scmp.ne.s32.totalorder %s71, %s74
      %p83 = scmp.eq.s32.totalorder %s19, 1
      %p84 = por %p82, %p83
      %p85 = scmp.ne.s32.totalorder %s74, %s75
      %p86 = scmp.eq.s32.totalorder %s19, 0
      %p87 = por %p85, %p86
      %p88 = scmp.ne.s32.totalorder %s74, %s75
      %p89 = scmp.eq.s32.totalorder %s20, 1
      %p90 = por %p88, %p89
      %p92 = scmp.ne.s32.totalorder %s75, %s91
      %p93 = scmp.eq.s32.totalorder %s20, 0
      %p94 = por %p92, %p93
      %s95 = ssub.s32 %s14, %s21
      %p96 = scmp.eq.s32.totalorder %s95, 0
      %s98 = sadd.s32 %s97, 1
      %s99 = scalar_select %p96, %s97, %s98
      %p102 = pneg %p96
      %p103 = scmp.eq.s32.totalorder %s14, 1
      %p104 = por %p102, %p103
      %p105 = scmp.ne.s32.totalorder %s97, %s100
      %p106 = scmp.eq.s32.totalorder %s14, 0
      %p107 = por %p105, %p106
      %p108 = scmp.ne.s32.totalorder %s97, %s100
      %p109 = scmp.eq.s32.totalorder %s19, 1
      %p110 = por %p108, %p109
      %p111 = scmp.ne.s32.totalorder %s100, %s101
      %p112 = scmp.eq.s32.totalorder %s19, 0
      %p113 = por %p111, %p112
      %p114 = scmp.ne.s32.totalorder %s100, %s101
      %p115 = scmp.eq.s32.totalorder %s20, 1
      %p116 = por %p114, %p115
      %p118 = scmp.ne.s32.totalorder %s101, %s117
      %p119 = scmp.eq.s32.totalorder %s20, 0
      %p120 = por %p118, %p119
      %s121 = ssub.s32 %s14, %s21
      %p122 = scmp.eq.s32.totalorder %s121, 0
      %s124 = sadd.s32 %s123, 1
      %s125 = scalar_select %p122, %s123, %s124
      %p128 = pneg %p122
      %p129 = scmp.eq.s32.totalorder %s14, 1
      %p130 = por %p128, %p129
      %p131 = scmp.ne.s32.totalorder %s123, %s126
      %p132 = scmp.eq.s32.totalorder %s14, 0
      %p133 = por %p131, %p132
      %p134 = scmp.ne.s32.totalorder %s123, %s126
      %p135 = scmp.eq.s32.totalorder %s19, 1
      %p136 = por %p134, %p135
      %p137 = scmp.ne.s32.totalorder %s126, %s127
      %p138 = scmp.eq.s32.totalorder %s19, 0
      %p139 = por %p137, %p138
      %p140 = scmp.ne.s32.totalorder %s126, %s127
      %p141 = scmp.eq.s32.totalorder %s20, 1
      %p142 = por %p140, %p141
      %p144 = scmp.ne.s32.totalorder %s127, %s143
      %p145 = scmp.eq.s32.totalorder %s20, 0
      %p146 = por %p144, %p145
      %p147 = scmp.le.s32.totalorder 1, %s14
      %p148 = scmp.lt.s32.totalorder %s14, 3
      %p149 = pnand %p147, %p148
      %p150 = pneg %p149
      // Predicated region
      $region9: #{_attention_fused.1} parent=5 // pred_check
        _
      $region10: #{_attention_fused.1} parent=5 // pred_check_branch
        %152 = sbr.rel (%p149) target = $region12
      $region11: #{_attention_fused.1} parent=5 // pred_region
        %s153 = ssub.s32 %s14, 1
        // Predicated region
        $region13: #{_attention_fused.1} parent=11 // pred_check
          %p154 = pneg %p35
        $region14: #{_attention_fused.1} parent=11 // pred_check_branch
          %156 = sbr.rel (%p154) target = $region16
        $region15: #{_attention_fused.1} parent=11 // pred_region
          _
        $region16: #{_attention_fused.1} parent=11 // pred_fallthru
          _
      $region12: #{_attention_fused.1} parent=5 // pred_fallthru
        _
      %p157 = scmp.lt.s32.totalorder %s14, 2
      // Predicated region
      $region17: #{_attention_fused.1} parent=5 // pred_check
        %p158 = pneg %p157
      $region18: #{_attention_fused.1} parent=5 // pred_check_branch
        %160 = sbr.rel (%p158) target = $region20
      $region19: #{_attention_fused.1} parent=5 // pred_region
        // Predicated region
        $region21: #{_attention_fused.1} parent=19 // pred_check
          %p161 = pneg %p55
        $region22: #{_attention_fused.1} parent=19 // pred_check_branch
          %163 = sbr.rel (%p161) target = $region24
        $region23: #{_attention_fused.1} parent=19 // pred_region
          %p164 = scmp.lt.s32.totalorder %s14, 1
          %s165 = scalar_select %p164, %s14, 1
          %s166 = smul.addr %s165, 16
          %s167 = smul.addr %s166, 8
          %s168 = scalar_lea.vmem %s1, %s167
        $region24: #{_attention_fused.1} parent=19 // pred_fallthru
          _
        // Predicated region
        $region25: #{_attention_fused.1} parent=19 // pred_check
          %p169 = pneg %p81
        $region26: #{_attention_fused.1} parent=19 // pred_check_branch
          %171 = sbr.rel (%p169) target = $region28
        $region27: #{_attention_fused.1} parent=19 // pred_region
          %p172 = scmp.lt.s32.totalorder %s14, 1
          %s173 = scalar_select %p172, %s14, 1
          %s174 = smul.addr %s173, 128
          %s175 = smul.addr %s174, 8
          %s176 = scalar_lea.vmem %s2, %s175
        $region28: #{_attention_fused.1} parent=19 // pred_fallthru
          _
        // Predicated region
        $region29: #{_attention_fused.1} parent=19 // pred_check
          %p177 = pneg %p107
        $region30: #{_attention_fused.1} parent=19 // pred_check_branch
          %179 = sbr.rel (%p177) target = $region32
        $region31: #{_attention_fused.1} parent=19 // pred_region
          %p180 = scmp.lt.s32.totalorder %s14, 1
          %s181 = scalar_select %p180, %s14, 1
          %s182 = smul.addr %s181, 16
          %s183 = smul.addr %s182, 8
          %s184 = scalar_lea.vmem %s3, %s183
        $region32: #{_attention_fused.1} parent=19 // pred_fallthru
          _
      $region20: #{_attention_fused.1} parent=5 // pred_fallthru
        _
      %p185 = scmp.le.s32.totalorder 1, %s14
      %p186 = scmp.lt.s32.totalorder %s14, 3
      %p187 = pnand %p185, %p186
      %p188 = pneg %p187
      // Predicated region
      $region33: #{_attention_fused.1} parent=5 // pred_check
        _
      $region34: #{_attention_fused.1} parent=5 // pred_check_branch
        %190 = sbr.rel (%p187) target = $region36
      $region35: #{_attention_fused.1} parent=5 // pred_region
        %s191 = ssub.s32 %s14, 1
        %p192 = pneg %p35
        %p193 = pneg %p32
        %p194 = scmp.lt.s32.totalorder %s19, 1
        %s195 = scalar_select %p194, %s19, 1
        %s196 = smul.addr %s195, 16
        %s197 = smul.addr %s196, 8
        %s198 = scalar_lea.vmem %s1, %s197
        %p199 = pneg %p61
        %p200 = pneg %p58
        %p201 = scmp.lt.s32.totalorder %s19, 1
        %s202 = scalar_select %p201, %s19, 1
        %s203 = smul.addr %s202, 128
        %s204 = smul.addr %s203, 8
        %s205 = scalar_lea.vmem %s2, %s204
        %p206 = pneg %p87
        %p207 = pneg %p84
        %p208 = scmp.lt.s32.totalorder %s19, 1
        %s209 = scalar_select %p208, %s19, 1
        %s210 = smul.addr %s209, 16
        %s211 = smul.addr %s210, 8
        %s212 = scalar_lea.vmem %s3, %s211
        %p213 = pneg %p113
        %p214 = pneg %p110
        %p215 = pneg %p139
        %p216 = pneg %p136
        %s217 = sand.u32 %s126, 1
        %s218 = scalar_lea.sflag [#allocation4], %s217
        %s219 = sand.u32 %s126, 1
        %s220 = smul.addr %s219, 128
        %s221 = scalar_lea.vmem [#allocation3], %s220
        %p222 = scmp.lt.s32.totalorder %s19, 1
        %s223 = scalar_select %p222, %s19, 1
        %s224 = smul.addr %s223, 16
        %s225 = smul.addr %s224, 8
        %s226 = scalar_lea.vmem %s1, %s225
        %p227 = scmp.lt.s32.totalorder %s19, 1
        %s228 = scalar_select %p227, %s19, 1
        %s229 = smul.addr %s228, 128
        %s230 = smul.addr %s229, 8
        %s231 = scalar_lea.vmem %s2, %s230
        %p232 = scmp.lt.s32.totalorder %s19, 1
        %s233 = scalar_select %p232, %s19, 1
        %s234 = smul.addr %s233, 16
        %s235 = smul.addr %s234, 8
        %s236 = scalar_lea.vmem %s3, %s235
        %s238 = sld [smem:[#allocation2]]
        loop: start=0, step=1, limit=8
        $region37: #{_attention_fused.1} parent=35 // loop_pre_header
          _
        $region38: #{_attention_fused.1} parent=35 // loop_header
          %s240 = sphi 0, %s244
          %p241 = scmp.ge.s32.totalorder %s240, 8
        $region39: #{_attention_fused.1} parent=35 // loop_header_branch
          %243 = sbr.rel (%p241) target = $region43
        $region40: #{_attention_fused.1} parent=35 // loop_body
          %s245 = smul.u32 %s240, 16
          %s246 = scalar_lea.vmem %s226, %s245
          %v247 = vld [vmem:[%s246] sm:$0xff]
          %v248 = vld [vmem:[%s246 + $0x8] sm:$0xff]
          %v249 = vstv %s238
          %v250 = vmul.f32 %v247, %v249
          %v251 = vmul.f32 %v248, %v249
          %s252 = smul.u32 %s240, 128
          %s253 = scalar_lea.vmem %s231, %s252
          %v254 = vld [vmem:[%s253] sm:$0xff]
          %v255 = vld [vmem:[%s253 + $0x8] sm:$0xff]
          %v256 = vld [vmem:[%s253 + $0x10] sm:$0xff]
          %v257 = vld [vmem:[%s253 + $0x18] sm:$0xff]
          %v258 = vld [vmem:[%s253 + $0x20] sm:$0xff]
          %v259 = vld [vmem:[%s253 + $0x28] sm:$0xff]
          %v260 = vld [vmem:[%s253 + $0x30] sm:$0xff]
          %v261 = vld [vmem:[%s253 + $0x38] sm:$0xff]
          %v262 = vld [vmem:[%s253 + $0x40] sm:$0xff]
          %v263 = vld [vmem:[%s253 + $0x48] sm:$0xff]
          %v264 = vld [vmem:[%s253 + $0x50] sm:$0xff]
          %v265 = vld [vmem:[%s253 + $0x58] sm:$0xff]
          %v266 = vld [vmem:[%s253 + $0x60] sm:$0xff]
          %v267 = vld [vmem:[%s253 + $0x68] sm:$0xff]
          %v268 = vld [vmem:[%s253 + $0x70] sm:$0xff]
          %v269 = vld [vmem:[%s253 + $0x78] sm:$0xff]
          %s270 = scalar_lea.vmem %s236, %s245
          %v271 = vld [vmem:[%s270] sm:$0xff]
          %v272 = vld [vmem:[%s270 + $0x8] sm:$0xff]
          %v273 = vpack.c.bf16 %v255, %v254
          %v274 = vpack.c.bf16 %v257, %v256
          %v275 = vpack.c.bf16 %v259, %v258
          %v276 = vpack.c.bf16 %v261, %v260
          %v277 = vpack.c.bf16 %v263, %v262
          %v278 = vpack.c.bf16 %v265, %v264
          %v279 = vpack.c.bf16 %v267, %v266
          %v280 = vpack.c.bf16 %v269, %v268
          %v281 = vpack.c.bf16 %v251, %v250
          %vm282 = vcmask 130048
          %v284 = vsel %vm282, %v273, 0
          %v287 = vsel %vm282, %v274, 0
          %v290 = vsel %vm282, %v275, 0
          %v293 = vsel %vm282, %v276, 0
          %v296 = vsel %vm282, %v277, 0
          %v299 = vsel %vm282, %v278, 0
          %v302 = vsel %vm282, %v279, 0
          %v305 = vsel %vm282, %v280, 0
          %307 = vmatprep.subr.bf16.mxu0 0
          %308 = vmatpush1.bf16.msra.mxu0 %v281
          %309 = vmatprep.subr.bf16.mxu0 0
          %310 = vmatpush1.bf16.msra.mxu0 0
          %311 = vmatprep.subr.bf16.mxu0 0
          %312 = vmatpush1.bf16.msra.mxu0 0
          %313 = vmatprep.subr.bf16.mxu0 0
          %314 = vmatpush1.bf16.msra.mxu0 0
          %315 = vmatprep.subr.bf16.mxu0 0
          %316 = vmatpush1.bf16.msra.mxu0 0
          %317 = vmatprep.subr.bf16.mxu0 0
          %318 = vmatpush1.bf16.msra.mxu0 0
          %319 = vmatprep.subr.bf16.mxu0 0
          %320 = vmatpush1.bf16.msra.mxu0 0
          %321 = vmatprep.subr.bf16.mxu0 0
          %322 = vmatpush1.bf16.msra.mxu0 0
          %323 = vmatprep.subr.bf16.mxu0 0
          %324 = vmatpush1.bf16.msra.mxu0 0
          %325 = vmatprep.subr.bf16.mxu0 0
          %326 = vmatpush1.bf16.msra.mxu0 0
          %327 = vmatprep.subr.bf16.mxu0 0
          %328 = vmatpush1.bf16.msra.mxu0 0
          %329 = vmatprep.subr.bf16.mxu0 0
          %330 = vmatpush1.bf16.msra.mxu0 0
          %331 = vmatprep.subr.bf16.mxu0 0
          %332 = vmatpush1.bf16.msra.mxu0 0
          %333 = vmatprep.subr.bf16.mxu0 0
          %334 = vmatpush1.bf16.msra.mxu0 0
          %335 = vmatprep.subr.bf16.mxu0 0
          %336 = vmatpush1.bf16.msra.mxu0 0
          %337 = vmatprep.subr.bf16.mxu0 0
          %338 = vmatpush1.bf16.msra.mxu0 0
          %339 = vmatprep.mubr.bf16.mxu0 0
          %340 = vmatmul.mubr.bf16.gmra.mrb[0].mxu0 %v284
          %v341 = vpop.f32.mrb[0].mxu0
          %v342 = vadd.f32 0.0, %v341
          %v343 = vpop.f32.mrb[0].mxu0
          %v344 = vpop.f32.mrb[0].mxu0
          %v345 = vadd.f32 0.0, %v344
          %v346 = vpop.f32.mrb[0].mxu0
          %347 = vmatprep.mubr.bf16.mxu0 0
          %348 = vmatmul.mubr.bf16.gmra.mrb[0].mxu0 %v287
          %v349 = vpop.f32.mrb[0].mxu0
          %v350 = vadd.f32 0.0, %v349
          %v351 = vpop.f32.mrb[0].mxu0
          %v352 = vpop.f32.mrb[0].mxu0
          %v353 = vadd.f32 0.0, %v352
          %v354 = vpop.f32.mrb[0].mxu0
          %355 = vmatprep.mubr.bf16.mxu0 0
          %356 = vmatmul.mubr.bf16.gmra.mrb[0].mxu0 %v290
          %v357 = vpop.f32.mrb[0].mxu0
          %v358 = vadd.f32 0.0, %v357
          %v359 = vpop.f32.mrb[0].mxu0
          %v360 = vpop.f32.mrb[0].mxu0
          %v361 = vadd.f32 0.0, %v360
          %v362 = vpop.f32.mrb[0].mxu0
          %363 = vmatprep.mubr.bf16.mxu0 0
          %364 = vmatmul.mubr.bf16.gmra.mrb[0].mxu0 %v293
          %v365 = vpop.f32.mrb[0].mxu0
          %v366 = vadd.f32 0.0, %v365
          %v367 = vpop.f32.mrb[0].mxu0
          %v368 = vpop.f32.mrb[0].mxu0
          %v369 = vadd.f32 0.0, %v368
          %v370 = vpop.f32.mrb[0].mxu0
          %371 = vmatprep.mubr.bf16.mxu0 0
          %372 = vmatmul.mubr.bf16.gmra.mrb[0].mxu0 %v296
          %v373 = vpop.f32.mrb[0].mxu0
          %v374 = vadd.f32 0.0, %v373
          %v375 = vpop.f32.mrb[0].mxu0
          %v376 = vpop.f32.mrb[0].mxu0
          %v377 = vadd.f32 0.0, %v376
          %v378 = vpop.f32.mrb[0].mxu0
          %379 = vmatprep.mubr.bf16.mxu0 0
          %380 = vmatmul.mubr.bf16.gmra.mrb[0].mxu0 %v299
          %v381 = vpop.f32.mrb[0].mxu0
          %v382 = vadd.f32 0.0, %v381
          %v383 = vpop.f32.mrb[0].mxu0
          %v384 = vpop.f32.mrb[0].mxu0
          %v385 = vadd.f32 0.0, %v384
          %v386 = vpop.f32.mrb[0].mxu0
          %387 = vmatprep.mubr.bf16.mxu0 0
          %388 = vmatmul.mubr.bf16.gmra.mrb[0].mxu0 %v302
          %v389 = vpop.f32.mrb[0].mxu0
          %v390 = vadd.f32 0.0, %v389
          %v391 = vpop.f32.mrb[0].mxu0
          %v392 = vpop.f32.mrb[0].mxu0
          %v393 = vadd.f32 0.0, %v392
          %v394 = vpop.f32.mrb[0].mxu0
          %395 = vmatprep.mubr.bf16.mxu0 0
          %396 = vmatmul.mubr.bf16.gmra.mrb[0].mxu0 %v305
          %v397 = vpop.f32.mrb[0].mxu0
          %v398 = vadd.f32 0.0, %v397
          %v399 = vpop.f32.mrb[0].mxu0
          %v400 = vpop.f32.mrb[0].mxu0
          %v401 = vadd.f32 0.0, %v400
          %v402 = vpop.f32.mrb[0].mxu0
          %403 = vdwg.mxu0
          %404 = vmax.xlane.f32.xlu0 %v342
          %v405 = vpop.xlane.xlu0 %404
          %406 = vmax.xlane.f32.xlu0 %v345
          %v407 = vpop.xlane.xlu0 %406
          %408 = vmax.xlane.f32.xlu0 %v350
          %v409 = vpop.xlane.xlu0 %408
          %410 = vmax.xlane.f32.xlu0 %v353
          %v411 = vpop.xlane.xlu0 %410
          %412 = vmax.xlane.f32.xlu0 %v358
          %v413 = vpop.xlane.xlu0 %412
          %414 = vmax.xlane.f32.xlu0 %v361
          %v415 = vpop.xlane.xlu0 %414
          %416 = vmax.xlane.f32.xlu0 %v366
          %v417 = vpop.xlane.xlu0 %416
          %418 = vmax.xlane.f32.xlu0 %v369
          %v419 = vpop.xlane.xlu0 %418
          %420 = vmax.xlane.f32.xlu0 %v374
          %v421 = vpop.xlane.xlu0 %420
          %422 = vmax.xlane.f32.xlu0 %v377
          %v423 = vpop.xlane.xlu0 %422
          %424 = vmax.xlane.f32.xlu0 %v382
          %v425 = vpop.xlane.xlu0 %424
          %426 = vmax.xlane.f32.xlu0 %v385
          %v427 = vpop.xlane.xlu0 %426
          %428 = vmax.xlane.f32.xlu0 %v390
          %v429 = vpop.xlane.xlu0 %428
          %430 = vmax.xlane.f32.xlu0 %v393
          %v431 = vpop.xlane.xlu0 %430
          %432 = vmax.xlane.f32.xlu0 %v398
          %v433 = vpop.xlane.xlu0 %432
          %434 = vmax.xlane.f32.xlu0 %v401
          %v435 = vpop.xlane.xlu0 %434
          %v436 = vsub.f32 %v342, %v405
          %v437 = vsub.f32 %v345, %v407
          %v438 = vsub.f32 %v350, %v409
          %v439 = vsub.f32 %v353, %v411
          %v440 = vsub.f32 %v358, %v413
          %v441 = vsub.f32 %v361, %v415
          %v442 = vsub.f32 %v366, %v417
          %v443 = vsub.f32 %v369, %v419
          %v444 = vsub.f32 %v374, %v421
          %v445 = vsub.f32 %v377, %v423
          %v446 = vsub.f32 %v382, %v425
          %v447 = vsub.f32 %v385, %v427
          %v448 = vsub.f32 %v390, %v429
          %v449 = vsub.f32 %v393, %v431
          %v450 = vsub.f32 %v398, %v433
          %v451 = vsub.f32 %v401, %v435
          %v452 = vmul.f32 %v436, 1.442695
          %v453 = vpow.pop %v452
          %v454 = vmul.f32 %v437, 1.442695
          %v455 = vpow.pop %v454
          %v456 = vmul.f32 %v438, 1.442695
          %v457 = vpow.pop %v456
          %v458 = vmul.f32 %v439, 1.442695
          %v459 = vpow.pop %v458
          %v460 = vmul.f32 %v440, 1.442695
          %v461 = vpow.pop %v460
          %v462 = vmul.f32 %v441, 1.442695
          %v463 = vpow.pop %v462
          %v464 = vmul.f32 %v442, 1.442695
          %v465 = vpow.pop %v464
          %v466 = vmul.f32 %v443, 1.442695
          %v467 = vpow.pop %v466
          %v468 = vmul.f32 %v444, 1.442695
          %v469 = vpow.pop %v468
          %v470 = vmul.f32 %v445, 1.442695
          %v471 = vpow.pop %v470
          %v472 = vmul.f32 %v446, 1.442695
          %v473 = vpow.pop %v472
          %v474 = vmul.f32 %v447, 1.442695
          %v475 = vpow.pop %v474
          %v476 = vmul.f32 %v448, 1.442695
          %v477 = vpow.pop %v476
          %v478 = vmul.f32 %v449, 1.442695
          %v479 = vpow.pop %v478
          %v480 = vmul.f32 %v450, 1.442695
          %v481 = vpow.pop %v480
          %v482 = vmul.f32 %v451, 1.442695
          %v483 = vpow.pop %v482
          %484 = vadd.xlane.f32.xlu0 %v453
          %v485 = vpop.xlane.xlu0 %484
          %486 = vadd.xlane.f32.xlu0 %v455
          %v487 = vpop.xlane.xlu0 %486
          %488 = vadd.xlane.f32.xlu0 %v457
          %v489 = vpop.xlane.xlu0 %488
          %490 = vadd.xlane.f32.xlu0 %v459
          %v491 = vpop.xlane.xlu0 %490
          %492 = vadd.xlane.f32.xlu0 %v461
          %v493 = vpop.xlane.xlu0 %492
          %494 = vadd.xlane.f32.xlu0 %v463
          %v495 = vpop.xlane.xlu0 %494
          %496 = vadd.xlane.f32.xlu0 %v465
          %v497 = vpop.xlane.xlu0 %496
          %498 = vadd.xlane.f32.xlu0 %v467
          %v499 = vpop.xlane.xlu0 %498
          %500 = vadd.xlane.f32.xlu0 %v469
          %v501 = vpop.xlane.xlu0 %500
          %502 = vadd.xlane.f32.xlu0 %v471
          %v503 = vpop.xlane.xlu0 %502
          %504 = vadd.xlane.f32.xlu0 %v473
          %v505 = vpop.xlane.xlu0 %504
          %506 = vadd.xlane.f32.xlu0 %v475
          %v507 = vpop.xlane.xlu0 %506
          %508 = vadd.xlane.f32.xlu0 %v477
          %v509 = vpop.xlane.xlu0 %508
          %510 = vadd.xlane.f32.xlu0 %v479
          %v511 = vpop.xlane.xlu0 %510
          %512 = vadd.xlane.f32.xlu0 %v481
          %v513 = vpop.xlane.xlu0 %512
          %514 = vadd.xlane.f32.xlu0 %v483
          %v515 = vpop.xlane.xlu0 %514
          %v516 = vrcp.pop %v485
          %v517 = vrcp.pop %v487
          %v518 = vrcp.pop %v489
          %v519 = vrcp.pop %v491
          %v520 = vrcp.pop %v493
          %v521 = vrcp.pop %v495
          %v522 = vrcp.pop %v497
          %v523 = vrcp.pop %v499
          %v524 = vrcp.pop %v501
          %v525 = vrcp.pop %v503
          %v526 = vrcp.pop %v505
          %v527 = vrcp.pop %v507
          %v528 = vrcp.pop %v509
          %v529 = vrcp.pop %v511
          %v530 = vrcp.pop %v513
          %v531 = vrcp.pop %v515
          %v532 = vmul.f32 %v453, %v516
          %v533 = vmul.f32 %v455, %v517
          %v534 = vmul.f32 %v457, %v518
          %v535 = vmul.f32 %v459, %v519
          %v536 = vmul.f32 %v461, %v520
          %v537 = vmul.f32 %v463, %v521
          %v538 = vmul.f32 %v465, %v522
          %v539 = vmul.f32 %v467, %v523
          %v540 = vmul.f32 %v469, %v524
          %v541 = vmul.f32 %v471, %v525
          %v542 = vmul.f32 %v473, %v526
          %v543 = vmul.f32 %v475, %v527
          %v544 = vmul.f32 %v477, %v528
          %v545 = vmul.f32 %v479, %v529
          %v546 = vmul.f32 %v481, %v530
          %v547 = vmul.f32 %v483, %v531
          %v548 = vpack.c.bf16 %v272, %v271
          %v549 = vpack.c.bf16 %v533, %v532
          %v550 = vpack.c.bf16 %v535, %v534
          %v551 = vpack.c.bf16 %v537, %v536
          %v552 = vpack.c.bf16 %v539, %v538
          %v553 = vpack.c.bf16 %v541, %v540
          %v554 = vpack.c.bf16 %v543, %v542
          %v555 = vpack.c.bf16 %v545, %v544
          %v556 = vpack.c.bf16 %v547, %v546
          %557 = vmatprep.subr.bf16.mxu0 0
          %558 = vmatpush1.bf16.msra.mxu0 %v549
          %559 = vmatprep.subr.bf16.mxu0 0
          %560 = vmatpush1.bf16.msra.mxu0 %v550
          %561 = vmatprep.subr.bf16.mxu0 0
          %562 = vmatpush1.bf16.msra.mxu0 %v551
          %563 = vmatprep.subr.bf16.mxu0 0
          %564 = vmatpush1.bf16.msra.mxu0 %v552
          %565 = vmatprep.subr.bf16.mxu0 0
          %566 = vmatpush1.bf16.msra.mxu0 %v553
          %567 = vmatprep.subr.bf16.mxu0 0
          %568 = vmatpush1.bf16.msra.mxu0 %v554
          %569 = vmatprep.subr.bf16.mxu0 0
          %570 = vmatpush1.bf16.msra.mxu0 %v555
          %571 = vmatprep.subr.bf16.mxu0 0
          %572 = vmatpush1.bf16.msra.mxu0 %v556
          %573 = vmatprep.subr.bf16.mxu0 0
          %574 = vmatpush1.bf16.msra.mxu0 0
          %575 = vmatprep.subr.bf16.mxu0 0
          %576 = vmatpush1.bf16.msra.mxu0 0
          %577 = vmatprep.subr.bf16.mxu0 0
          %578 = vmatpush1.bf16.msra.mxu0 0
          %579 = vmatprep.subr.bf16.mxu0 0
          %580 = vmatpush1.bf16.msra.mxu0 0
          %581 = vmatprep.subr.bf16.mxu0 0
          %582 = vmatpush1.bf16.msra.mxu0 0
          %583 = vmatprep.subr.bf16.mxu0 0
          %584 = vmatpush1.bf16.msra.mxu0 0
          %585 = vmatprep.subr.bf16.mxu0 0
          %586 = vmatpush1.bf16.msra.mxu0 0
          %587 = vmatprep.subr.bf16.mxu0 0
          %588 = vmatpush1.bf16.msra.mxu0 0
          %589 = vmatprep.mubr.bf16.mxu0 0
          %590 = vmatmul.mubr.bf16.gmra.mrb[0].mxu0 %v548
          %v591 = vpop.f32.mrb[0].mxu0
          %v592 = vadd.f32 0.0, %v591
          %v593 = vpop.f32.mrb[0].mxu0
          %v594 = vpop.f32.mrb[0].mxu0
          %v595 = vadd.f32 0.0, %v594
          %v596 = vpop.f32.mrb[0].mxu0
          %597 = vdwg.mxu0
          %s598 = scalar_lea.vmem %s221, %s245 [#allocation3]
          %599 = vst [vmem:[%s598] sm:$0xff] %v592
          %600 = vst [vmem:[%s598 + $0x8] sm:$0xff] %v595
        $region41: #{_attention_fused.1} parent=35 // loop_footer
          %s244 = sadd.s32 1, %s240
        $region42: #{_attention_fused.1} parent=35 // loop_footer_branch
          %239 = sbr.rel target = $region38
        $region43: #{_attention_fused.1} parent=35 // loop_exit
          _
        %s601 = sand.u32 %s126, 1
        %s602 = scalar_lea.sflag [#allocation4], %s601
        %s603 = sand.u32 %s126, 1
        %s604 = smul.addr %s603, 128
        %s605 = scalar_lea.vmem [#allocation3], %s604
        // Predicated region
        $region44: #{_attention_fused.1} parent=35 // pred_check
          %p606 = pneg %p136
        $region45: #{_attention_fused.1} parent=35 // pred_check_branch
          %608 = sbr.rel (%p606) target = $region47
        $region46: #{_attention_fused.1} parent=35 // pred_region
          %s610 = ssub.s32 2048, 2048
          %611 = vsyncadd %s602, %s610
          %s612 = smul.addr %s19, 16
          %s613 = smul.addr %s612, 128
          %s614 = scalar_lea.hbm %s4, %s613
          %s615 = sshll.u32 %s605, 4
          %s616 = int_to_ptr.vmem [resolvable:$true] %s615
          %621 = dma.vmem_to_hbm [thread:$0]  %s616, 2048, %s614, %s602, 128, 128, 8
        $region47: #{_attention_fused.1} parent=35 // pred_fallthru
          _
      $region36: #{_attention_fused.1} parent=5 // pred_fallthru
        _
      %p622 = scmp.le.s32.totalorder 2, %s14
      // Predicated region
      $region48: #{_attention_fused.1} parent=5 // pred_check
        %p623 = pneg %p622
      $region49: #{_attention_fused.1} parent=5 // pred_check_branch
        %625 = sbr.rel (%p623) target = $region51
      $region50: #{_attention_fused.1} parent=5 // pred_region
        %s626 = ssub.s32 %s14, 2
        // Predicated region
        $region52: #{_attention_fused.1} parent=50 // pred_check
          %p627 = pneg %p142
        $region53: #{_attention_fused.1} parent=50 // pred_check_branch
          %629 = sbr.rel (%p627) target = $region55
        $region54: #{_attention_fused.1} parent=50 // pred_region
          %s630 = sand.u32 %s127, 1
          %s631 = scalar_lea.sflag [#allocation4], %s630
          %s632 = sand.u32 %s127, 1
          %s633 = smul.addr %s632, 128
          %s634 = scalar_lea.vmem [#allocation3], %s633
          %635 = dma.done %s631, 2048
        $region55: #{_attention_fused.1} parent=50 // pred_fallthru
          _
      $region51: #{_attention_fused.1} parent=5 // pred_fallthru
        _
    $region6: #{_attention_fused.1} parent=1 // loop_footer
      %s18 = sadd.s32 1, %s14
    $region7: #{_attention_fused.1} parent=1 // loop_footer_branch
      %13 = sbr.rel target = $region3
    $region8: #{_attention_fused.1} parent=1 // loop_exit
      _
    %636 = vsyncpa [#allocation4], 1
    %s637 = scalar_lea.sflag [#allocation4], 1
    %638 = vsyncpa %s637, 1

</llo_original>
